<compile_context>
chip_gen: v7x
topology: tpu7x:2x2x1
jax: 0.10.0
libtpu: 0.0.40
codegen_flags: <defaults>
</compile_context>

<pallas_src>
import jax
import jax.numpy as jnp
from jax.experimental import pallas as pl
from jax.experimental.pallas import tpu as pltpu

HIDDEN_LAYERS = 3
INPUT_SIZE = 11
OUTPUT_SIZE = 1
LANE = 128
SUBLANE = 8


def _round_up(n, m):
    return ((n + m - 1) // m) * m


def mlp_kernel(x_ref,
               w0_ref, b0_ref,
               w1_ref, b1_ref,
               w2_ref, b2_ref,
               w3_ref, b3_ref,
               w4_ref, b4_ref,
               o_ref,
               xpad_ref):
    """Full MLP forward for one batch tile of `tb` rows.

    x_ref    : (tb, 11) f32            raw input rows (no lane padding in HBM)
    w0..w3   : zero-padded bf16 weights, b0..b3 zero-padded f32 biases
    w4_ref   : (1, hid_p) bf16         final layer weight column as a row
    b4_ref   : (1, 128) f32            final layer bias broadcast to all lanes
    o_ref    : (tb//128, 128) f32      lane-dense output: o[g, c] = y[g*128+c]
    xpad_ref : (tb, 128) f32 scratch   lane-padded copy of the input
    """
    tb = x_ref.shape[0]
    hid_p = w0_ref.shape[1]

    # Lane-pad the input inside VMEM.  Padding lanes must be exactly zero so
    # they stay zero through every ReLU; re-zero every step (with a "parallel"
    # grid the scratch is per-core, so a step-0-only init would be unsafe).
    xpad_ref[...] = jnp.zeros_like(xpad_ref)
    xpad_ref[:, :INPUT_SIZE] = x_ref[...].astype(jnp.float32)
    h = xpad_ref[...].astype(jnp.bfloat16)

    # Linear(11, hid) + ReLU, then 3 x (Linear(hid, hid) + ReLU).
    # bf16 MXU operands, f32 accumulation / bias add / ReLU.
    h = jnp.dot(h, w0_ref[...], preferred_element_type=jnp.float32) + b0_ref[...]
    h = jnp.maximum(h, 0.0).astype(jnp.bfloat16)
    h = jnp.dot(h, w1_ref[...], preferred_element_type=jnp.float32) + b1_ref[...]
    h = jnp.maximum(h, 0.0).astype(jnp.bfloat16)
    h = jnp.dot(h, w2_ref[...], preferred_element_type=jnp.float32) + b2_ref[...]
    h = jnp.maximum(h, 0.0).astype(jnp.bfloat16)
    h = jnp.dot(h, w3_ref[...], preferred_element_type=jnp.float32) + b3_ref[...]
    h = jnp.maximum(h, 0.0).astype(jnp.bfloat16)

    # Final Linear(hid, 1), written lane-dense in *real* batch elements:
    #   o[g, c] = sum_k h[g*128 + c, k] * W4[k] + b4
    # Expressed as a batched (flash-attention style) matvec so the result
    # lands with the batch on lanes; no padded output columns hit HBM.
    g = tb // LANE
    h3 = h.reshape(g, LANE, hid_p)                       # free leading-dim split
    w4b = jnp.broadcast_to(w4_ref[...].reshape(1, 1, hid_p), (g, 1, hid_p))
    yo = jnp.einsum('gok,gck->goc', w4b, h3,
                    preferred_element_type=jnp.float32)  # (g, 1, 128)
    o_ref[...] = (yo[:, 0, :] + b4_ref[...]).astype(o_ref.dtype)


def init_params(key, hidden_size, dtype=jnp.float32):
    """Deterministic synthetic init matching nn.Linear shapes.

    Returns a flat list [W0, b0, ..., W4, b4] with W stored [in, out]
    (i.e. already transposed vs. torch) and b stored [1, out].
    """
    dims = [INPUT_SIZE] + [hidden_size] * (HIDDEN_LAYERS + 1) + [OUTPUT_SIZE]
    params = []
    for i in range(len(dims) - 1):
        fan_in, fan_out = dims[i], dims[i + 1]
        key, kw, kb = jax.random.split(key, 3)
        bound = 1.0 / jnp.sqrt(fan_in)
        w = jax.random.uniform(kw, (fan_in, fan_out), dtype, -bound, bound)
        b = jax.random.uniform(kb, (1, fan_out), dtype, -bound, bound)
        params += [w, b]
    return params


def pack_params(params):
    """One-time lane padding + dtype packing of the Linear params (hoisted out
    of the per-call path).  Zero padding keeps padded lanes exactly zero
    through every ReLU.
    """
    hidden = params[0].shape[1]
    in_p = _round_up(INPUT_SIZE, LANE)
    hid_p = _round_up(hidden, LANE)

    packed = []
    in_dims = [in_p] + [hid_p] * HIDDEN_LAYERS
    for li in range(HIDDEN_LAYERS + 1):
        w, b = params[2 * li], params[2 * li + 1]
        wp = jnp.zeros((in_dims[li], hid_p), jnp.bfloat16)
        wp = wp.at[:w.shape[0], :w.shape[1]].set(w.astype(jnp.bfloat16))
        bp = jnp.zeros((1, hid_p), jnp.float32)
        bp = bp.at[:, :b.shape[1]].set(b.astype(jnp.float32))
        packed += [wp, bp]

    w4, b4 = params[-2], params[-1]                      # (hidden, 1), (1, 1)
    w4_row = jnp.zeros((1, hid_p), jnp.bfloat16)
    w4_row = w4_row.at[0, :hidden].set(w4[:, 0].astype(jnp.bfloat16))
    b4_row = jnp.full((1, LANE), b4[0, 0], jnp.float32)
    packed += [w4_row, b4_row]
    return packed


def net_forward(x, packed, *, tb=None):
    """Pallas forward pass.  `packed` must come from pack_params()."""
    B, F = x.shape
    assert F == INPUT_SIZE, (F, INPUT_SIZE)
    in_p, hid_p = packed[0].shape

    # Batch tile: multiple of 128 so the output is written as full 128-lane
    # rows of real elements.  Large B -> 1024-row tiles and >=2 grid steps
    # (v7x megacore); small/medium B -> whole 128-rounded batch in one step.
    if tb is None:
        tb = 1024 if B >= 2048 else _round_up(B, LANE)
    assert tb % LANE == 0, tb
    b_pad = _round_up(B, tb)
    n_steps = b_pad // tb
    assert n_steps == 1 or (tb // LANE) % SUBLANE == 0, tb

    # Only a cheap row pad; lane padding + bf16 cast happen inside the kernel.
    x_in = x if b_pad == B else jnp.pad(x, ((0, b_pad - B), (0, 0)))

    # x / out tiles stream over the batch grid; weights & biases stay
    # VMEM-resident (constant block index across all grid steps).
    x_spec = pl.BlockSpec((tb, INPUT_SIZE), lambda i: (i, 0))
    param_specs = [pl.BlockSpec(p.shape, lambda i: (0, 0)) for p in packed]
    out_spec = pl.BlockSpec((tb // LANE, LANE), lambda i: (i, 0))

    nbytes = lambda a: int(a.size) * a.dtype.itemsize
    bytes_accessed = int(nbytes(x_in) + (b_pad // LANE) * LANE * 4
                         + sum(nbytes(p) for p in packed))
    flops = int(2 * b_pad * (in_p * hid_p + HIDDEN_LAYERS * hid_p * hid_p + hid_p))

    out2d = pl.pallas_call(
        mlp_kernel,
        grid=(n_steps,),
        in_specs=[x_spec] + param_specs,
        out_specs=out_spec,
        out_shape=jax.ShapeDtypeStruct((b_pad // LANE, LANE), jnp.float32),
        scratch_shapes=[pltpu.VMEM((tb, in_p), jnp.float32)],
        compiler_params=pltpu.CompilerParams(
            dimension_semantics=("parallel",)),
        cost_estimate=pl.CostEstimate(
            flops=flops, transcendentals=0, bytes_accessed=bytes_accessed),
    )(x_in, *packed)

    # Row g, lane c of out2d is batch element g*128 + c.
    return out2d.reshape(-1)[:B].reshape(B, OUTPUT_SIZE).astype(x.dtype)


def net_forward_ref(x, params):
    """Pure-JAX f32 reference (original module semantics)."""
    h = x
    for i in range(0, len(params) - 2, 2):
        h = jnp.maximum(h @ params[i] + params[i + 1], 0.0)
    return h @ params[-2] + params[-1]


if __name__ == "__main__":
    hidden_size = 32
    batch = 8

    key = jax.random.PRNGKey(0)
    key, kx = jax.random.split(key)
    x = jax.random.normal(kx, (batch, INPUT_SIZE), jnp.float32)
    params = init_params(key, hidden_size)
    packed = pack_params(params)          # one-time param packing

    out = net_forward(x, packed)
    out = jax.block_until_ready(out)

    ref = net_forward_ref(x, params)
    assert out.shape == (batch, OUTPUT_SIZE), out.shape
    # bf16 matmul operands with f32 accumulation -> loose tolerance vs f32 ref.
    assert jnp.allclose(out, ref, atol=5e-2, rtol=5e-2), (out, ref)

    print("KERNEL_OK")
</pallas_src>

<mosaic_0001>
module attributes {stable_mosaic.version = 11 : i64} {
  func.func @mlp_kernel(%arg0: i32, %arg1: memref<128x11xf32, #tpu.memory_space<vmem>>, %arg2: memref<128x128xbf16, #tpu.memory_space<vmem>>, %arg3: memref<1x128xf32, #tpu.memory_space<vmem>>, %arg4: memref<128x128xbf16, #tpu.memory_space<vmem>>, %arg5: memref<1x128xf32, #tpu.memory_space<vmem>>, %arg6: memref<128x128xbf16, #tpu.memory_space<vmem>>, %arg7: memref<1x128xf32, #tpu.memory_space<vmem>>, %arg8: memref<128x128xbf16, #tpu.memory_space<vmem>>, %arg9: memref<1x128xf32, #tpu.memory_space<vmem>>, %arg10: memref<1x128xbf16, #tpu.memory_space<vmem>>, %arg11: memref<1x128xf32, #tpu.memory_space<vmem>>, %arg12: memref<1x128xf32, #tpu.memory_space<vmem>>, %arg13: memref<128x128xf32, #tpu.memory_space<vmem>>) attributes {dimension_semantics = [#tpu.dimension_semantics<parallel>], iteration_bounds = array<i64: 1>, scalar_prefetch = 0 : i64, scratch_operands = 1 : i64, tpu.core_type = #tpu.core_type<tc>, window_params = [{transform_indices = @transform_0, window_bounds = array<i64: 128, 11>}, {pipeline_mode = #tpu.pipeline_mode<synchronous>, transform_indices = @transform_1, window_bounds = array<i64: 128, 128>}, {pipeline_mode = #tpu.pipeline_mode<synchronous>, transform_indices = @transform_2, window_bounds = array<i64: 1, 128>}, {pipeline_mode = #tpu.pipeline_mode<synchronous>, transform_indices = @transform_3, window_bounds = array<i64: 128, 128>}, {pipeline_mode = #tpu.pipeline_mode<synchronous>, transform_indices = @transform_4, window_bounds = array<i64: 1, 128>}, {pipeline_mode = #tpu.pipeline_mode<synchronous>, transform_indices = @transform_5, window_bounds = array<i64: 128, 128>}, {pipeline_mode = #tpu.pipeline_mode<synchronous>, transform_indices = @transform_6, window_bounds = array<i64: 1, 128>}, {pipeline_mode = #tpu.pipeline_mode<synchronous>, transform_indices = @transform_7, window_bounds = array<i64: 128, 128>}, {pipeline_mode = #tpu.pipeline_mode<synchronous>, transform_indices = @transform_8, window_bounds = array<i64: 1, 128>}, {pipeline_mode = #tpu.pipeline_mode<synchronous>, transform_indices = @transform_9, window_bounds = array<i64: 1, 128>}, {pipeline_mode = #tpu.pipeline_mode<synchronous>, transform_indices = @transform_10, window_bounds = array<i64: 1, 128>}, {transform_indices = @transform_11, window_bounds = array<i64: 1, 128>}]} {
    %cst = arith.constant 0.000000e+00 : f32
    %0 = vector.broadcast %cst : f32 to vector<128x128xf32>
    %c0 = arith.constant 0 : index
    %c0_0 = arith.constant 0 : index
    %1 = vector.load %arg13[%c0, %c0_0] : memref<128x128xf32, #tpu.memory_space<vmem>>, vector<128x128xf32>
    tpu.vector_store %arg13[%c0, %c0_0], %0 {strides = array<i32>} : memref<128x128xf32, #tpu.memory_space<vmem>>, vector<128x128xf32>,
    %c0_1 = arith.constant 0 : index
    %c0_2 = arith.constant 0 : index
    %2 = vector.load %arg1[%c0_1, %c0_2] : memref<128x11xf32, #tpu.memory_space<vmem>>, vector<128x11xf32>
    %c0_3 = arith.constant 0 : index
    %c0_4 = arith.constant 0 : index
    %3 = vector.load %arg13[%c0_3, %c0_4] : memref<128x128xf32, #tpu.memory_space<vmem>>, vector<128x11xf32>
    tpu.vector_store %arg13[%c0_3, %c0_4], %2 {strides = array<i32>} : memref<128x128xf32, #tpu.memory_space<vmem>>, vector<128x11xf32>,
    %c0_5 = arith.constant 0 : index
    %c0_6 = arith.constant 0 : index
    %4 = vector.load %arg13[%c0_5, %c0_6] : memref<128x128xf32, #tpu.memory_space<vmem>>, vector<128x128xf32>
    %5 = arith.truncf %4 : vector<128x128xf32> to vector<128x128xbf16>
    %c0_7 = arith.constant 0 : index
    %c0_8 = arith.constant 0 : index
    %6 = vector.load %arg2[%c0_7, %c0_8] : memref<128x128xbf16, #tpu.memory_space<vmem>>, vector<128x128xbf16>
    %cst_9 = arith.constant dense<0.000000e+00> : vector<128x128xf32>
    %7 = tpu.matmul %5, %6, %cst_9 {dimension_numbers = #tpu.dot_dimension_numbers<[1], [0], [0], [1], [0, 0, 1, 1], [], []>} : vector<128x128xbf16>, vector<128x128xbf16>, vector<128x128xf32> -> vector<128x128xf32>
    %c0_10 = arith.constant 0 : index
    %c0_11 = arith.constant 0 : index
    %8 = vector.load %arg3[%c0_10, %c0_11] : memref<1x128xf32, #tpu.memory_space<vmem>>, vector<1x128xf32>
    %9 = vector.broadcast %8 : vector<1x128xf32> to vector<128x128xf32>
    %10 = arith.addf %7, %9 : vector<128x128xf32>
    %cst_12 = arith.constant 0.000000e+00 : f32
    %11 = vector.broadcast %cst_12 : f32 to vector<128x128xf32>
    %12 = arith.maximumf %10, %11 : vector<128x128xf32>
    %13 = arith.truncf %12 : vector<128x128xf32> to vector<128x128xbf16>
    %c0_13 = arith.constant 0 : index
    %c0_14 = arith.constant 0 : index
    %14 = vector.load %arg4[%c0_13, %c0_14] : memref<128x128xbf16, #tpu.memory_space<vmem>>, vector<128x128xbf16>
    %cst_15 = arith.constant dense<0.000000e+00> : vector<128x128xf32>
    %15 = tpu.matmul %13, %14, %cst_15 {dimension_numbers = #tpu.dot_dimension_numbers<[1], [0], [0], [1], [0, 0, 1, 1], [], []>} : vector<128x128xbf16>, vector<128x128xbf16>, vector<128x128xf32> -> vector<128x128xf32>
    %c0_16 = arith.constant 0 : index
    %c0_17 = arith.constant 0 : index
    %16 = vector.load %arg5[%c0_16, %c0_17] : memref<1x128xf32, #tpu.memory_space<vmem>>, vector<1x128xf32>
    %17 = vector.broadcast %16 : vector<1x128xf32> to vector<128x128xf32>
    %18 = arith.addf %15, %17 : vector<128x128xf32>
    %cst_18 = arith.constant 0.000000e+00 : f32
    %19 = vector.broadcast %cst_18 : f32 to vector<128x128xf32>
    %20 = arith.maximumf %18, %19 : vector<128x128xf32>
    %21 = arith.truncf %20 : vector<128x128xf32> to vector<128x128xbf16>
    %c0_19 = arith.constant 0 : index
    %c0_20 = arith.constant 0 : index
    %22 = vector.load %arg6[%c0_19, %c0_20] : memref<128x128xbf16, #tpu.memory_space<vmem>>, vector<128x128xbf16>
    %cst_21 = arith.constant dense<0.000000e+00> : vector<128x128xf32>
    %23 = tpu.matmul %21, %22, %cst_21 {dimension_numbers = #tpu.dot_dimension_numbers<[1], [0], [0], [1], [0, 0, 1, 1], [], []>} : vector<128x128xbf16>, vector<128x128xbf16>, vector<128x128xf32> -> vector<128x128xf32>
    %c0_22 = arith.constant 0 : index
    %c0_23 = arith.constant 0 : index
    %24 = vector.load %arg7[%c0_22, %c0_23] : memref<1x128xf32, #tpu.memory_space<vmem>>, vector<1x128xf32>
    %25 = vector.broadcast %24 : vector<1x128xf32> to vector<128x128xf32>
    %26 = arith.addf %23, %25 : vector<128x128xf32>
    %cst_24 = arith.constant 0.000000e+00 : f32
    %27 = vector.broadcast %cst_24 : f32 to vector<128x128xf32>
    %28 = arith.maximumf %26, %27 : vector<128x128xf32>
    %29 = arith.truncf %28 : vector<128x128xf32> to vector<128x128xbf16>
    %c0_25 = arith.constant 0 : index
    %c0_26 = arith.constant 0 : index
    %30 = vector.load %arg8[%c0_25, %c0_26] : memref<128x128xbf16, #tpu.memory_space<vmem>>, vector<128x128xbf16>
    %cst_27 = arith.constant dense<0.000000e+00> : vector<128x128xf32>
    %31 = tpu.matmul %29, %30, %cst_27 {dimension_numbers = #tpu.dot_dimension_numbers<[1], [0], [0], [1], [0, 0, 1, 1], [], []>} : vector<128x128xbf16>, vector<128x128xbf16>, vector<128x128xf32> -> vector<128x128xf32>
    %c0_28 = arith.constant 0 : index
    %c0_29 = arith.constant 0 : index
    %32 = vector.load %arg9[%c0_28, %c0_29] : memref<1x128xf32, #tpu.memory_space<vmem>>, vector<1x128xf32>
    %33 = vector.broadcast %32 : vector<1x128xf32> to vector<128x128xf32>
    %34 = arith.addf %31, %33 : vector<128x128xf32>
    %cst_30 = arith.constant 0.000000e+00 : f32
    %35 = vector.broadcast %cst_30 : f32 to vector<128x128xf32>
    %36 = arith.maximumf %34, %35 : vector<128x128xf32>
    %37 = arith.truncf %36 : vector<128x128xf32> to vector<128x128xbf16>
    %38 = vector.shape_cast %37 : vector<128x128xbf16> to vector<1x128x128xbf16>
    %c0_31 = arith.constant 0 : index
    %c0_32 = arith.constant 0 : index
    %39 = vector.load %arg10[%c0_31, %c0_32] : memref<1x128xbf16, #tpu.memory_space<vmem>>, vector<1x128xbf16>
    %40 = vector.shape_cast %39 : vector<1x128xbf16> to vector<1x1x128xbf16>
    "tpu.trace_start"() <{level = 10 : i32, message = "gok,gck->goc"}> : () -> ()
    %cst_33 = arith.constant dense<0.000000e+00> : vector<1x1x128xf32>
    %41 = tpu.matmul %40, %38, %cst_33 {dimension_numbers = #tpu.dot_dimension_numbers<[2], [2], [1], [1], [0, 0, 0, 1, 1, 1], [0], [0]>} : vector<1x1x128xbf16>, vector<1x128x128xbf16>, vector<1x1x128xf32> -> vector<1x1x128xf32>
    "tpu.trace_stop"() : () -> ()
    %42 = vector.shape_cast %41 : vector<1x1x128xf32> to vector<1x128xf32>
    %c0_34 = arith.constant 0 : index
    %c0_35 = arith.constant 0 : index
    %43 = vector.load %arg11[%c0_34, %c0_35] : memref<1x128xf32, #tpu.memory_space<vmem>>, vector<1x128xf32>
    %44 = arith.addf %42, %43 : vector<1x128xf32>
    %c0_36 = arith.constant 0 : index
    %c0_37 = arith.constant 0 : index
    %45 = vector.load %arg12[%c0_36, %c0_37] : memref<1x128xf32, #tpu.memory_space<vmem>>, vector<1x128xf32>
    tpu.vector_store %arg12[%c0_36, %c0_37], %44 {strides = array<i32>} : memref<1x128xf32, #tpu.memory_space<vmem>>, vector<1x128xf32>,
    return
  }
  func.func @transform_0(%arg0: i32) -> (i32, i32) {
    %c0_i32 = arith.constant 0 : i32
    %c0_i32_0 = arith.constant 0 : i32
    return %arg0, %c0_i32 : i32, i32
  }
  func.func @transform_1(%arg0: i32) -> (i32, i32) {
    %c0_i32 = arith.constant 0 : i32
    %c0_i32_0 = arith.constant 0 : i32
    %c0_i32_1 = arith.constant 0 : i32
    return %c0_i32, %c0_i32_0 : i32, i32
  }
  func.func @transform_2(%arg0: i32) -> (i32, i32) {
    %c0_i32 = arith.constant 0 : i32
    %c0_i32_0 = arith.constant 0 : i32
    %c0_i32_1 = arith.constant 0 : i32
    return %c0_i32, %c0_i32_0 : i32, i32
  }
  func.func @transform_3(%arg0: i32) -> (i32, i32) {
    %c0_i32 = arith.constant 0 : i32
    %c0_i32_0 = arith.constant 0 : i32
    %c0_i32_1 = arith.constant 0 : i32
    return %c0_i32, %c0_i32_0 : i32, i32
  }
  func.func @transform_4(%arg0: i32) -> (i32, i32) {
    %c0_i32 = arith.constant 0 : i32
    %c0_i32_0 = arith.constant 0 : i32
    %c0_i32_1 = arith.constant 0 : i32
    return %c0_i32, %c0_i32_0 : i32, i32
  }
  func.func @transform_5(%arg0: i32) -> (i32, i32) {
    %c0_i32 = arith.constant 0 : i32
    %c0_i32_0 = arith.constant 0 : i32
    %c0_i32_1 = arith.constant 0 : i32
    return %c0_i32, %c0_i32_0 : i32, i32
  }
  func.func @transform_6(%arg0: i32) -> (i32, i32) {
    %c0_i32 = arith.constant 0 : i32
    %c0_i32_0 = arith.constant 0 : i32
    %c0_i32_1 = arith.constant 0 : i32
    return %c0_i32, %c0_i32_0 : i32, i32
  }
  func.func @transform_7(%arg0: i32) -> (i32, i32) {
    %c0_i32 = arith.constant 0 : i32
    %c0_i32_0 = arith.constant 0 : i32
    %c0_i32_1 = arith.constant 0 : i32
    return %c0_i32, %c0_i32_0 : i32, i32
  }
  func.func @transform_8(%arg0: i32) -> (i32, i32) {
    %c0_i32 = arith.constant 0 : i32
    %c0_i32_0 = arith.constant 0 : i32
    %c0_i32_1 = arith.constant 0 : i32
    return %c0_i32, %c0_i32_0 : i32, i32
  }
  func.func @transform_9(%arg0: i32) -> (i32, i32) {
    %c0_i32 = arith.constant 0 : i32
    %c0_i32_0 = arith.constant 0 : i32
    %c0_i32_1 = arith.constant 0 : i32
    return %c0_i32, %c0_i32_0 : i32, i32
  }
  func.func @transform_10(%arg0: i32) -> (i32, i32) {
    %c0_i32 = arith.constant 0 : i32
    %c0_i32_0 = arith.constant 0 : i32
    %c0_i32_1 = arith.constant 0 : i32
    return %c0_i32, %c0_i32_0 : i32, i32
  }
  func.func @transform_11(%arg0: i32) -> (i32, i32) {
    %c0_i32 = arith.constant 0 : i32
    %c0_i32_0 = arith.constant 0 : i32
    return %arg0, %c0_i32 : i32, i32
  }
}

</mosaic_0001>

<llo_original>
// kernel: tpu_custom_call.1
$region0: #{tpu_custom_call.1}
  #allocation0 [shape = 'u32[]', space=smem, size = 0x4, offset = 0x4, fixed_abs, tag = 'smem constant byte address 0x4 - core index']
  #allocation1 [shape = 'u32[144,128]{1,0:T(1,128)}', space=vmem, size = 0x12000, scoped, tag = 'internal scratch']
  #allocation2 [shape = 'f32[128,128]{1,0:T(8,128)}', space=vmem, size = 0x10000, scoped, tag = 'scratch operand']
  %s0 = inlined_call_operand.vmem [shape: f32[128,11], index: 0, kind: input, shape index: {}]
  %s1 = inlined_call_operand.vmem [shape: bf16[128,128], index: 1, kind: input, shape index: {}]
  %s2 = inlined_call_operand.vmem [shape: f32[1,128], index: 2, kind: input, shape index: {}]
  %s3 = inlined_call_operand.vmem [shape: bf16[128,128], index: 3, kind: input, shape index: {}]
  %s4 = inlined_call_operand.vmem [shape: f32[1,128], index: 4, kind: input, shape index: {}]
  %s5 = inlined_call_operand.hbm [shape: bf16[128,128], index: 5, kind: input, shape index: {}]
  %s6 = inlined_call_operand.vmem [shape: f32[1,128], index: 6, kind: input, shape index: {}]
  %s7 = inlined_call_operand.hbm [shape: bf16[128,128], index: 7, kind: input, shape index: {}]
  %s8 = inlined_call_operand.vmem [shape: f32[1,128], index: 8, kind: input, shape index: {}]
  %s9 = inlined_call_operand.vmem [shape: bf16[1,128], index: 9, kind: input, shape index: {}]
  %s10 = inlined_call_operand.vmem [shape: f32[1,128], index: 10, kind: input, shape index: {}]
  %s11 = inlined_call_operand.hbm [shape: f32[1,128], index: 11, kind: output, shape index: {}]
  %s12 = sld [smem:[#allocation0]]
  $region62: #{tpu_custom_call.1} parent=0
    _
  %s14 = ssub.s32 1, %s12
  %s15 = scalar_select 0, %s14, %s12
  $region1: #{tpu_custom_call.1} parent=0
    #allocation3 [shape = 'u8[32768]{0}', space=vmem, size = 0x8000, scoped, tag = 'input window, operand 5, single buffered']
    #allocation4 [shape = 's32[1]{0}', space=sflag, size = 0x4, scoped, tag = 'scoped memory for tpu_custom_call.1']
    #allocation5 [shape = 's32[1]{0}', space=sflag, size = 0x4, scoped, tag = 'scoped memory for tpu_custom_call.1']
    #allocation6 [shape = 'u8[32768]{0}', space=vmem, size = 0x8000, scoped, tag = 'input window, operand 7, single buffered']
    #allocation7 [shape = 's32[1]{0}', space=sflag, size = 0x4, scoped, tag = 'scoped memory for tpu_custom_call.1']
    #allocation8 [shape = 'u8[512]{0}', space=vmem, size = 0x400, scoped, tag = 'output window, operand 0, single buffered']
    %16 = vsyncpa [#allocation4], 0
    %17 = vsyncpa [#allocation7], 0
    %18 = vsyncpa [#allocation5], 0
    // Predicated region
    $region2: #{tpu_custom_call.1} parent=1 // pred_check
      _
    $region3: #{tpu_custom_call.1} parent=1 // pred_check_branch
      %20 = sbr.rel (0) target = $region5
    $region4: #{tpu_custom_call.1} parent=1 // pred_region
      _
    $region5: #{tpu_custom_call.1} parent=1 // pred_fallthru
      _
    // Predicated region
    $region6: #{tpu_custom_call.1} parent=1 // pred_check
      _
    $region7: #{tpu_custom_call.1} parent=1 // pred_check_branch
      %22 = sbr.rel (0) target = $region9
    $region8: #{tpu_custom_call.1} parent=1 // pred_region
      _
    $region9: #{tpu_custom_call.1} parent=1 // pred_fallthru
      _
    // Predicated region
    $region10: #{tpu_custom_call.1} parent=1 // pred_check
      _
    $region11: #{tpu_custom_call.1} parent=1 // pred_check_branch
      %24 = sbr.rel (0) target = $region13
    $region12: #{tpu_custom_call.1} parent=1 // pred_region
      _
    $region13: #{tpu_custom_call.1} parent=1 // pred_fallthru
      _
    // Predicated region
    $region14: #{tpu_custom_call.1} parent=1 // pred_check
      _
    $region15: #{tpu_custom_call.1} parent=1 // pred_check_branch
      %26 = sbr.rel (0) target = $region17
    $region16: #{tpu_custom_call.1} parent=1 // pred_region
      _
    $region17: #{tpu_custom_call.1} parent=1 // pred_fallthru
      _
    // Predicated region
    $region18: #{tpu_custom_call.1} parent=1 // pred_check
      _
    $region19: #{tpu_custom_call.1} parent=1 // pred_check_branch
      %28 = sbr.rel (0) target = $region21
    $region20: #{tpu_custom_call.1} parent=1 // pred_region
      _
    $region21: #{tpu_custom_call.1} parent=1 // pred_fallthru
      _
    // Predicated region
    $region22: #{tpu_custom_call.1} parent=1 // pred_check
      _
    $region23: #{tpu_custom_call.1} parent=1 // pred_check_branch
      %30 = sbr.rel (0) target = $region25
    $region24: #{tpu_custom_call.1} parent=1 // pred_region
      %s32 = ssub.s32 1024, 1024
      %33 = vsyncadd [#allocation4], %s32
      %s34 = sshll.u32 [#allocation3], 4
      %s35 = int_to_ptr.vmem [resolvable:$true] %s34
      %40 = dma.hbm_to_vmem [thread:$0]  %s5, 1024, %s35, [#allocation4], 64, 64, 4
    $region25: #{tpu_custom_call.1} parent=1 // pred_fallthru
      _
    // Predicated region
    $region26: #{tpu_custom_call.1} parent=1 // pred_check
      _
    $region27: #{tpu_custom_call.1} parent=1 // pred_check_branch
      %42 = sbr.rel (0) target = $region29
    $region28: #{tpu_custom_call.1} parent=1 // pred_region
      _
    $region29: #{tpu_custom_call.1} parent=1 // pred_fallthru
      _
    // Predicated region
    $region30: #{tpu_custom_call.1} parent=1 // pred_check
      _
    $region31: #{tpu_custom_call.1} parent=1 // pred_check_branch
      %44 = sbr.rel (0) target = $region33
    $region32: #{tpu_custom_call.1} parent=1 // pred_region
      %s46 = ssub.s32 1024, 1024
      %47 = vsyncadd [#allocation7], %s46
      %s48 = sshll.u32 [#allocation6], 4
      %s49 = int_to_ptr.vmem [resolvable:$true] %s48
      %54 = dma.hbm_to_vmem [thread:$0]  %s7, 1024, %s49, [#allocation7], 64, 64, 4
    $region33: #{tpu_custom_call.1} parent=1 // pred_fallthru
      _
    // Predicated region
    $region34: #{tpu_custom_call.1} parent=1 // pred_check
      _
    $region35: #{tpu_custom_call.1} parent=1 // pred_check_branch
      %56 = sbr.rel (0) target = $region37
    $region36: #{tpu_custom_call.1} parent=1 // pred_region
      _
    $region37: #{tpu_custom_call.1} parent=1 // pred_fallthru
      _
    // Predicated region
    $region38: #{tpu_custom_call.1} parent=1 // pred_check
      _
    $region39: #{tpu_custom_call.1} parent=1 // pred_check_branch
      %58 = sbr.rel (0) target = $region41
    $region40: #{tpu_custom_call.1} parent=1 // pred_region
      _
    $region41: #{tpu_custom_call.1} parent=1 // pred_fallthru
      _
    // Predicated region
    $region42: #{tpu_custom_call.1} parent=1 // pred_check
      _
    $region43: #{tpu_custom_call.1} parent=1 // pred_check_branch
      %60 = sbr.rel (0) target = $region45
    $region44: #{tpu_custom_call.1} parent=1 // pred_region
      _
    $region45: #{tpu_custom_call.1} parent=1 // pred_fallthru
      _
    // Predicated region
    $region46: #{tpu_custom_call.1} parent=1 // pred_check
      _
    $region47: #{tpu_custom_call.1} parent=1 // pred_check_branch
      %62 = sbr.rel (0) target = $region49
    $region48: #{tpu_custom_call.1} parent=1 // pred_region
      %63 = dma.done [#allocation4], 1024
    $region49: #{tpu_custom_call.1} parent=1 // pred_fallthru
      _
    // Predicated region
    $region50: #{tpu_custom_call.1} parent=1 // pred_check
      _
    $region51: #{tpu_custom_call.1} parent=1 // pred_check_branch
      %65 = sbr.rel (0) target = $region53
    $region52: #{tpu_custom_call.1} parent=1 // pred_region
      %66 = dma.done [#allocation7], 1024
    $region53: #{tpu_custom_call.1} parent=1 // pred_fallthru
      _
    %68 = vst [vmem:[#allocation2] sm:$0xff] 0.0
    %69 = vst [vmem:[#allocation2 + $0x8] sm:$0xff] 0.0
    %70 = vst [vmem:[#allocation2 + $0x10] sm:$0xff] 0.0
    %71 = vst [vmem:[#allocation2 + $0x18] sm:$0xff] 0.0
    %72 = vst [vmem:[#allocation2 + $0x20] sm:$0xff] 0.0
    %73 = vst [vmem:[#allocation2 + $0x28] sm:$0xff] 0.0
    %74 = vst [vmem:[#allocation2 + $0x30] sm:$0xff] 0.0
    %75 = vst [vmem:[#allocation2 + $0x38] sm:$0xff] 0.0
    %76 = vst [vmem:[#allocation2 + $0x40] sm:$0xff] 0.0
    %77 = vst [vmem:[#allocation2 + $0x48] sm:$0xff] 0.0
    %78 = vst [vmem:[#allocation2 + $0x50] sm:$0xff] 0.0
    %79 = vst [vmem:[#allocation2 + $0x58] sm:$0xff] 0.0
    %80 = vst [vmem:[#allocation2 + $0x60] sm:$0xff] 0.0
    %81 = vst [vmem:[#allocation2 + $0x68] sm:$0xff] 0.0
    %82 = vst [vmem:[#allocation2 + $0x70] sm:$0xff] 0.0
    %83 = vst [vmem:[#allocation2 + $0x78] sm:$0xff] 0.0
    %v84 = vld [vmem:[%s0] sm:$0xff]
    %v85 = vld [vmem:[%s0 + $0x8] sm:$0xff]
    %v86 = vld [vmem:[%s0 + $0x10] sm:$0xff]
    %v87 = vld [vmem:[%s0 + $0x18] sm:$0xff]
    %v88 = vld [vmem:[%s0 + $0x20] sm:$0xff]
    %v89 = vld [vmem:[%s0 + $0x28] sm:$0xff]
    %v90 = vld [vmem:[%s0 + $0x30] sm:$0xff]
    %v91 = vld [vmem:[%s0 + $0x38] sm:$0xff]
    %v92 = vld [vmem:[%s0 + $0x40] sm:$0xff]
    %v93 = vld [vmem:[%s0 + $0x48] sm:$0xff]
    %v94 = vld [vmem:[%s0 + $0x50] sm:$0xff]
    %v95 = vld [vmem:[%s0 + $0x58] sm:$0xff]
    %v96 = vld [vmem:[%s0 + $0x60] sm:$0xff]
    %v97 = vld [vmem:[%s0 + $0x68] sm:$0xff]
    %v98 = vld [vmem:[%s0 + $0x70] sm:$0xff]
    %v99 = vld [vmem:[%s0 + $0x78] sm:$0xff]
    %vm100 = vcmask 89088
    %101 = vst.msk [vmem:[#allocation2] sm:$0xff] %vm100, %v84
    %102 = vst.msk [vmem:[#allocation2 + $0x8] sm:$0xff] %vm100, %v85
    %103 = vst.msk [vmem:[#allocation2 + $0x10] sm:$0xff] %vm100, %v86
    %104 = vst.msk [vmem:[#allocation2 + $0x18] sm:$0xff] %vm100, %v87
    %105 = vst.msk [vmem:[#allocation2 + $0x20] sm:$0xff] %vm100, %v88
    %106 = vst.msk [vmem:[#allocation2 + $0x28] sm:$0xff] %vm100, %v89
    %107 = vst.msk [vmem:[#allocation2 + $0x30] sm:$0xff] %vm100, %v90
    %108 = vst.msk [vmem:[#allocation2 + $0x38] sm:$0xff] %vm100, %v91
    %109 = vst.msk [vmem:[#allocation2 + $0x40] sm:$0xff] %vm100, %v92
    %110 = vst.msk [vmem:[#allocation2 + $0x48] sm:$0xff] %vm100, %v93
    %111 = vst.msk [vmem:[#allocation2 + $0x50] sm:$0xff] %vm100, %v94
    %112 = vst.msk [vmem:[#allocation2 + $0x58] sm:$0xff] %vm100, %v95
    %113 = vst.msk [vmem:[#allocation2 + $0x60] sm:$0xff] %vm100, %v96
    %114 = vst.msk [vmem:[#allocation2 + $0x68] sm:$0xff] %vm100, %v97
    %115 = vst.msk [vmem:[#allocation2 + $0x70] sm:$0xff] %vm100, %v98
    %116 = vst.msk [vmem:[#allocation2 + $0x78] sm:$0xff] %vm100, %v99
    %v117 = vld [vmem:[#allocation2] sm:$0xff]
    %v118 = vld [vmem:[#allocation2 + $0x8] sm:$0xff]
    %v119 = vld [vmem:[#allocation2 + $0x10] sm:$0xff]
    %v120 = vld [vmem:[#allocation2 + $0x18] sm:$0xff]
    %v121 = vld [vmem:[#allocation2 + $0x20] sm:$0xff]
    %v122 = vld [vmem:[#allocation2 + $0x28] sm:$0xff]
    %v123 = vld [vmem:[#allocation2 + $0x30] sm:$0xff]
    %v124 = vld [vmem:[#allocation2 + $0x38] sm:$0xff]
    %v125 = vld [vmem:[#allocation2 + $0x40] sm:$0xff]
    %v126 = vld [vmem:[#allocation2 + $0x48] sm:$0xff]
    %v127 = vld [vmem:[#allocation2 + $0x50] sm:$0xff]
    %v128 = vld [vmem:[#allocation2 + $0x58] sm:$0xff]
    %v129 = vld [vmem:[#allocation2 + $0x60] sm:$0xff]
    %v130 = vld [vmem:[#allocation2 + $0x68] sm:$0xff]
    %v131 = vld [vmem:[#allocation2 + $0x70] sm:$0xff]
    %v132 = vld [vmem:[#allocation2 + $0x78] sm:$0xff]
    %v133 = vpack.c.bf16 %v118, %v117
    %v134 = vpack.c.bf16 %v120, %v119
    %v135 = vpack.c.bf16 %v122, %v121
    %v136 = vpack.c.bf16 %v124, %v123
    %v137 = vpack.c.bf16 %v126, %v125
    %v138 = vpack.c.bf16 %v128, %v127
    %v139 = vpack.c.bf16 %v130, %v129
    %v140 = vpack.c.bf16 %v132, %v131
    %v141 = vld [vmem:[%s1] sm:$0xf]
    %v142 = vld [vmem:[%s1 + $0x4] sm:$0xf]
    %v143 = vld [vmem:[%s1 + $0x8] sm:$0xf]
    %v144 = vld [vmem:[%s1 + $0xc] sm:$0xf]
    %v145 = vld [vmem:[%s1 + $0x10] sm:$0xf]
    %v146 = vld [vmem:[%s1 + $0x14] sm:$0xf]
    %v147 = vld [vmem:[%s1 + $0x18] sm:$0xf]
    %v148 = vld [vmem:[%s1 + $0x1c] sm:$0xf]
    %v149 = vld [vmem:[%s1 + $0x20] sm:$0xf]
    %v150 = vld [vmem:[%s1 + $0x24] sm:$0xf]
    %v151 = vld [vmem:[%s1 + $0x28] sm:$0xf]
    %v152 = vld [vmem:[%s1 + $0x2c] sm:$0xf]
    %v153 = vld [vmem:[%s1 + $0x30] sm:$0xf]
    %v154 = vld [vmem:[%s1 + $0x34] sm:$0xf]
    %v155 = vld [vmem:[%s1 + $0x38] sm:$0xf]
    %v156 = vld [vmem:[%s1 + $0x3c] sm:$0xf]
    %v157 = vld [vmem:[%s2] sm:$0x1]
    %v159 = vlaneseq
    %v160 = vshrl.u32 %v159, 7
    %v161 = vsub.s32 0, %v160
    %v162 = vrot.slane %v157, %v161
    %v180 = vunpack.c.l.b16 %v141
    %v181 = vunpack.c.l.b16 %v142
    %v182 = vunpack.c.l.b16 %v143
    %v183 = vunpack.c.l.b16 %v144
    %v184 = vunpack.c.l.b16 %v145
    %v185 = vunpack.c.l.b16 %v146
    %v186 = vunpack.c.l.b16 %v147
    %v187 = vunpack.c.l.b16 %v148
    %v188 = vunpack.c.l.b16 %v149
    %v189 = vunpack.c.l.b16 %v150
    %v190 = vunpack.c.l.b16 %v151
    %v191 = vunpack.c.l.b16 %v152
    %v192 = vunpack.c.l.b16 %v153
    %v193 = vunpack.c.l.b16 %v154
    %v194 = vunpack.c.l.b16 %v155
    %v195 = vunpack.c.l.b16 %v156
    %v196 = vpack.c.b16 %v181, %v180
    %v197 = vpack.c.b16 %v183, %v182
    %v198 = vpack.c.b16 %v185, %v184
    %v199 = vpack.c.b16 %v187, %v186
    %v200 = vpack.c.b16 %v189, %v188
    %v201 = vpack.c.b16 %v191, %v190
    %v202 = vpack.c.b16 %v193, %v192
    %v203 = vpack.c.b16 %v195, %v194
    %212 = vmatprep.subr.bf16.mxu0 0
    %213 = vmatpush1.bf16.msra.mxu0 %v196
    %214 = vmatprep.subr.bf16.mxu0 0
    %215 = vmatpush1.bf16.msra.mxu0 %v197
    %216 = vmatprep.subr.bf16.mxu0 0
    %217 = vmatpush1.bf16.msra.mxu0 %v198
    %218 = vmatprep.subr.bf16.mxu0 0
    %219 = vmatpush1.bf16.msra.mxu0 %v199
    %220 = vmatprep.subr.bf16.mxu0 0
    %221 = vmatpush1.bf16.msra.mxu0 %v200
    %222 = vmatprep.subr.bf16.mxu0 0
    %223 = vmatpush1.bf16.msra.mxu0 %v201
    %224 = vmatprep.subr.bf16.mxu0 0
    %225 = vmatpush1.bf16.msra.mxu0 %v202
    %226 = vmatprep.subr.bf16.mxu0 0
    %227 = vmatpush1.bf16.msra.mxu0 %v203
    %228 = vmatprep.subr.bf16.mxu0 0
    %229 = vmatpush1.bf16.msra.mxu0 0
    %230 = vmatprep.subr.bf16.mxu0 0
    %231 = vmatpush1.bf16.msra.mxu0 0
    %232 = vmatprep.subr.bf16.mxu0 0
    %233 = vmatpush1.bf16.msra.mxu0 0
    %234 = vmatprep.subr.bf16.mxu0 0
    %235 = vmatpush1.bf16.msra.mxu0 0
    %236 = vmatprep.subr.bf16.mxu0 0
    %237 = vmatpush1.bf16.msra.mxu0 0
    %238 = vmatprep.subr.bf16.mxu0 0
    %239 = vmatpush1.bf16.msra.mxu0 0
    %240 = vmatprep.subr.bf16.mxu0 0
    %241 = vmatpush1.bf16.msra.mxu0 0
    %242 = vmatprep.subr.bf16.mxu0 0
    %243 = vmatpush1.bf16.msra.mxu0 0
    %244 = vmatprep.mubr.bf16.mxu0 0
    %245 = vmatmul.mubr.bf16.gmra.mrb[0].mxu0 %v133
    %v246 = vpop.f32.mrb[0].mxu0
    %v247 = vadd.f32 %v162, %v246
    %v248 = vpop.f32.mrb[0].mxu0
    %v249 = vpop.f32.mrb[0].mxu0
    %v250 = vadd.f32 %v162, %v249
    %v251 = vpop.f32.mrb[0].mxu0
    %252 = vmatprep.mubr.bf16.mxu0 0
    %253 = vmatmul.mubr.bf16.gmra.mrb[0].mxu0 %v134
    %v254 = vpop.f32.mrb[0].mxu0
    %v255 = vadd.f32 %v162, %v254
    %v256 = vpop.f32.mrb[0].mxu0
    %v257 = vpop.f32.mrb[0].mxu0
    %v258 = vadd.f32 %v162, %v257
    %v259 = vpop.f32.mrb[0].mxu0
    %260 = vmatprep.mubr.bf16.mxu0 0
    %261 = vmatmul.mubr.bf16.gmra.mrb[0].mxu0 %v135
    %v262 = vpop.f32.mrb[0].mxu0
    %v263 = vadd.f32 %v162, %v262
    %v264 = vpop.f32.mrb[0].mxu0
    %v265 = vpop.f32.mrb[0].mxu0
    %v266 = vadd.f32 %v162, %v265
    %v267 = vpop.f32.mrb[0].mxu0
    %268 = vmatprep.mubr.bf16.mxu0 0
    %269 = vmatmul.mubr.bf16.gmra.mrb[0].mxu0 %v136
    %v270 = vpop.f32.mrb[0].mxu0
    %v271 = vadd.f32 %v162, %v270
    %v272 = vpop.f32.mrb[0].mxu0
    %v273 = vpop.f32.mrb[0].mxu0
    %v274 = vadd.f32 %v162, %v273
    %v275 = vpop.f32.mrb[0].mxu0
    %276 = vmatprep.mubr.bf16.mxu0 0
    %277 = vmatmul.mubr.bf16.gmra.mrb[0].mxu0 %v137
    %v278 = vpop.f32.mrb[0].mxu0
    %v279 = vadd.f32 %v162, %v278
    %v280 = vpop.f32.mrb[0].mxu0
    %v281 = vpop.f32.mrb[0].mxu0
    %v282 = vadd.f32 %v162, %v281
    %v283 = vpop.f32.mrb[0].mxu0
    %284 = vmatprep.mubr.bf16.mxu0 0
    %285 = vmatmul.mubr.bf16.gmra.mrb[0].mxu0 %v138
    %v286 = vpop.f32.mrb[0].mxu0
    %v287 = vadd.f32 %v162, %v286
    %v288 = vpop.f32.mrb[0].mxu0
    %v289 = vpop.f32.mrb[0].mxu0
    %v290 = vadd.f32 %v162, %v289
    %v291 = vpop.f32.mrb[0].mxu0
    %292 = vmatprep.mubr.bf16.mxu0 0
    %293 = vmatmul.mubr.bf16.gmra.mrb[0].mxu0 %v139
    %v294 = vpop.f32.mrb[0].mxu0
    %v295 = vadd.f32 %v162, %v294
    %v296 = vpop.f32.mrb[0].mxu0
    %v297 = vpop.f32.mrb[0].mxu0
    %v298 = vadd.f32 %v162, %v297
    %v299 = vpop.f32.mrb[0].mxu0
    %300 = vmatprep.mubr.bf16.mxu0 0
    %301 = vmatmul.mubr.bf16.gmra.mrb[0].mxu0 %v140
    %v302 = vpop.f32.mrb[0].mxu0
    %v303 = vadd.f32 %v162, %v302
    %v304 = vpop.f32.mrb[0].mxu0
    %v305 = vpop.f32.mrb[0].mxu0
    %v306 = vadd.f32 %v162, %v305
    %v307 = vpop.f32.mrb[0].mxu0
    %308 = vdwg.mxu0
    %v309 = vmax.f32 %v247, 0.0
    %v310 = vmax.f32 %v250, 0.0
    %v311 = vmax.f32 %v255, 0.0
    %v312 = vmax.f32 %v258, 0.0
    %v313 = vmax.f32 %v263, 0.0
    %v314 = vmax.f32 %v266, 0.0
    %v315 = vmax.f32 %v271, 0.0
    %v316 = vmax.f32 %v274, 0.0
    %v317 = vmax.f32 %v279, 0.0
    %v318 = vmax.f32 %v282, 0.0
    %v319 = vmax.f32 %v287, 0.0
    %v320 = vmax.f32 %v290, 0.0
    %v321 = vmax.f32 %v295, 0.0
    %v322 = vmax.f32 %v298, 0.0
    %v323 = vmax.f32 %v303, 0.0
    %v324 = vmax.f32 %v306, 0.0
    %v325 = vpack.c.bf16 %v310, %v309
    %v326 = vpack.c.bf16 %v312, %v311
    %v327 = vpack.c.bf16 %v314, %v313
    %v328 = vpack.c.bf16 %v316, %v315
    %v329 = vpack.c.bf16 %v318, %v317
    %v330 = vpack.c.bf16 %v320, %v319
    %v331 = vpack.c.bf16 %v322, %v321
    %v332 = vpack.c.bf16 %v324, %v323
    %v333 = vld [vmem:[%s3] sm:$0xf]
    %v334 = vld [vmem:[%s3 + $0x4] sm:$0xf]
    %v335 = vld [vmem:[%s3 + $0x8] sm:$0xf]
    %v336 = vld [vmem:[%s3 + $0xc] sm:$0xf]
    %v337 = vld [vmem:[%s3 + $0x10] sm:$0xf]
    %v338 = vld [vmem:[%s3 + $0x14] sm:$0xf]
    %v339 = vld [vmem:[%s3 + $0x18] sm:$0xf]
    %v340 = vld [vmem:[%s3 + $0x1c] sm:$0xf]
    %v341 = vld [vmem:[%s3 + $0x20] sm:$0xf]
    %v342 = vld [vmem:[%s3 + $0x24] sm:$0xf]
    %v343 = vld [vmem:[%s3 + $0x28] sm:$0xf]
    %v344 = vld [vmem:[%s3 + $0x2c] sm:$0xf]
    %v345 = vld [vmem:[%s3 + $0x30] sm:$0xf]
    %v346 = vld [vmem:[%s3 + $0x34] sm:$0xf]
    %v347 = vld [vmem:[%s3 + $0x38] sm:$0xf]
    %v348 = vld [vmem:[%s3 + $0x3c] sm:$0xf]
    %v349 = vld [vmem:[%s4] sm:$0x1]
    %v351 = vlaneseq
    %v352 = vshrl.u32 %v351, 7
    %v353 = vsub.s32 0, %v352
    %v354 = vrot.slane %v349, %v353
    %v372 = vunpack.c.l.b16 %v333
    %v373 = vunpack.c.l.b16 %v334
    %v374 = vunpack.c.l.b16 %v335
    %v375 = vunpack.c.l.b16 %v336
    %v376 = vunpack.c.l.b16 %v337
    %v377 = vunpack.c.l.b16 %v338
    %v378 = vunpack.c.l.b16 %v339
    %v379 = vunpack.c.l.b16 %v340
    %v380 = vunpack.c.l.b16 %v341
    %v381 = vunpack.c.l.b16 %v342
    %v382 = vunpack.c.l.b16 %v343
    %v383 = vunpack.c.l.b16 %v344
    %v384 = vunpack.c.l.b16 %v345
    %v385 = vunpack.c.l.b16 %v346
    %v386 = vunpack.c.l.b16 %v347
    %v387 = vunpack.c.l.b16 %v348
    %v388 = vpack.c.b16 %v373, %v372
    %v389 = vpack.c.b16 %v375, %v374
    %v390 = vpack.c.b16 %v377, %v376
    %v391 = vpack.c.b16 %v379, %v378
    %v392 = vpack.c.b16 %v381, %v380
    %v393 = vpack.c.b16 %v383, %v382
    %v394 = vpack.c.b16 %v385, %v384
    %v395 = vpack.c.b16 %v387, %v386
    %404 = vmatprep.subr.bf16.mxu0 0
    %405 = vmatpush1.bf16.msra.mxu0 %v388
    %406 = vmatprep.subr.bf16.mxu0 0
    %407 = vmatpush1.bf16.msra.mxu0 %v389
    %408 = vmatprep.subr.bf16.mxu0 0
    %409 = vmatpush1.bf16.msra.mxu0 %v390
    %410 = vmatprep.subr.bf16.mxu0 0
    %411 = vmatpush1.bf16.msra.mxu0 %v391
    %412 = vmatprep.subr.bf16.mxu0 0
    %413 = vmatpush1.bf16.msra.mxu0 %v392
    %414 = vmatprep.subr.bf16.mxu0 0
    %415 = vmatpush1.bf16.msra.mxu0 %v393
    %416 = vmatprep.subr.bf16.mxu0 0
    %417 = vmatpush1.bf16.msra.mxu0 %v394
    %418 = vmatprep.subr.bf16.mxu0 0
    %419 = vmatpush1.bf16.msra.mxu0 %v395
    %420 = vmatprep.subr.bf16.mxu0 0
    %421 = vmatpush1.bf16.msra.mxu0 0
    %422 = vmatprep.subr.bf16.mxu0 0
    %423 = vmatpush1.bf16.msra.mxu0 0
    %424 = vmatprep.subr.bf16.mxu0 0
    %425 = vmatpush1.bf16.msra.mxu0 0
    %426 = vmatprep.subr.bf16.mxu0 0
    %427 = vmatpush1.bf16.msra.mxu0 0
    %428 = vmatprep.subr.bf16.mxu0 0
    %429 = vmatpush1.bf16.msra.mxu0 0
    %430 = vmatprep.subr.bf16.mxu0 0
    %431 = vmatpush1.bf16.msra.mxu0 0
    %432 = vmatprep.subr.bf16.mxu0 0
    %433 = vmatpush1.bf16.msra.mxu0 0
    %434 = vmatprep.subr.bf16.mxu0 0
    %435 = vmatpush1.bf16.msra.mxu0 0
    %436 = vmatprep.mubr.bf16.mxu0 0
    %437 = vmatmul.mubr.bf16.gmra.mrb[0].mxu0 %v325
    %v438 = vpop.f32.mrb[0].mxu0
    %v439 = vadd.f32 %v354, %v438
    %v440 = vpop.f32.mrb[0].mxu0
    %v441 = vpop.f32.mrb[0].mxu0
    %v442 = vadd.f32 %v354, %v441
    %v443 = vpop.f32.mrb[0].mxu0
    %444 = vmatprep.mubr.bf16.mxu0 0
    %445 = vmatmul.mubr.bf16.gmra.mrb[0].mxu0 %v326
    %v446 = vpop.f32.mrb[0].mxu0
    %v447 = vadd.f32 %v354, %v446
    %v448 = vpop.f32.mrb[0].mxu0
    %v449 = vpop.f32.mrb[0].mxu0
    %v450 = vadd.f32 %v354, %v449
    %v451 = vpop.f32.mrb[0].mxu0
    %452 = vmatprep.mubr.bf16.mxu0 0
    %453 = vmatmul.mubr.bf16.gmra.mrb[0].mxu0 %v327
    %v454 = vpop.f32.mrb[0].mxu0
    %v455 = vadd.f32 %v354, %v454
    %v456 = vpop.f32.mrb[0].mxu0
    %v457 = vpop.f32.mrb[0].mxu0
    %v458 = vadd.f32 %v354, %v457
    %v459 = vpop.f32.mrb[0].mxu0
    %460 = vmatprep.mubr.bf16.mxu0 0
    %461 = vmatmul.mubr.bf16.gmra.mrb[0].mxu0 %v328
    %v462 = vpop.f32.mrb[0].mxu0
    %v463 = vadd.f32 %v354, %v462
    %v464 = vpop.f32.mrb[0].mxu0
    %v465 = vpop.f32.mrb[0].mxu0
    %v466 = vadd.f32 %v354, %v465
    %v467 = vpop.f32.mrb[0].mxu0
    %468 = vmatprep.mubr.bf16.mxu0 0
    %469 = vmatmul.mubr.bf16.gmra.mrb[0].mxu0 %v329
    %v470 = vpop.f32.mrb[0].mxu0
    %v471 = vadd.f32 %v354, %v470
    %v472 = vpop.f32.mrb[0].mxu0
    %v473 = vpop.f32.mrb[0].mxu0
    %v474 = vadd.f32 %v354, %v473
    %v475 = vpop.f32.mrb[0].mxu0
    %476 = vmatprep.mubr.bf16.mxu0 0
    %477 = vmatmul.mubr.bf16.gmra.mrb[0].mxu0 %v330
    %v478 = vpop.f32.mrb[0].mxu0
    %v479 = vadd.f32 %v354, %v478
    %v480 = vpop.f32.mrb[0].mxu0
    %v481 = vpop.f32.mrb[0].mxu0
    %v482 = vadd.f32 %v354, %v481
    %v483 = vpop.f32.mrb[0].mxu0
    %484 = vmatprep.mubr.bf16.mxu0 0
    %485 = vmatmul.mubr.bf16.gmra.mrb[0].mxu0 %v331
    %v486 = vpop.f32.mrb[0].mxu0
    %v487 = vadd.f32 %v354, %v486
    %v488 = vpop.f32.mrb[0].mxu0
    %v489 = vpop.f32.mrb[0].mxu0
    %v490 = vadd.f32 %v354, %v489
    %v491 = vpop.f32.mrb[0].mxu0
    %492 = vmatprep.mubr.bf16.mxu0 0
    %493 = vmatmul.mubr.bf16.gmra.mrb[0].mxu0 %v332
    %v494 = vpop.f32.mrb[0].mxu0
    %v495 = vadd.f32 %v354, %v494
    %v496 = vpop.f32.mrb[0].mxu0
    %v497 = vpop.f32.mrb[0].mxu0
    %v498 = vadd.f32 %v354, %v497
    %v499 = vpop.f32.mrb[0].mxu0
    %500 = vdwg.mxu0
    %v501 = vmax.f32 %v439, 0.0
    %v502 = vmax.f32 %v442, 0.0
    %v503 = vmax.f32 %v447, 0.0
    %v504 = vmax.f32 %v450, 0.0
    %v505 = vmax.f32 %v455, 0.0
    %v506 = vmax.f32 %v458, 0.0
    %v507 = vmax.f32 %v463, 0.0
    %v508 = vmax.f32 %v466, 0.0
    %v509 = vmax.f32 %v471, 0.0
    %v510 = vmax.f32 %v474, 0.0
    %v511 = vmax.f32 %v479, 0.0
    %v512 = vmax.f32 %v482, 0.0
    %v513 = vmax.f32 %v487, 0.0
    %v514 = vmax.f32 %v490, 0.0
    %v515 = vmax.f32 %v495, 0.0
    %v516 = vmax.f32 %v498, 0.0
    %v517 = vpack.c.bf16 %v502, %v501
    %v518 = vpack.c.bf16 %v504, %v503
    %v519 = vpack.c.bf16 %v506, %v505
    %v520 = vpack.c.bf16 %v508, %v507
    %v521 = vpack.c.bf16 %v510, %v509
    %v522 = vpack.c.bf16 %v512, %v511
    %v523 = vpack.c.bf16 %v514, %v513
    %v524 = vpack.c.bf16 %v516, %v515
    %v525 = vld [vmem:[#allocation3] sm:$0xf]
    %v526 = vld [vmem:[#allocation3 + $0x4] sm:$0xf]
    %v527 = vld [vmem:[#allocation3 + $0x8] sm:$0xf]
    %v528 = vld [vmem:[#allocation3 + $0xc] sm:$0xf]
    %v529 = vld [vmem:[#allocation3 + $0x10] sm:$0xf]
    %v530 = vld [vmem:[#allocation3 + $0x14] sm:$0xf]
    %v531 = vld [vmem:[#allocation3 + $0x18] sm:$0xf]
    %v532 = vld [vmem:[#allocation3 + $0x1c] sm:$0xf]
    %v533 = vld [vmem:[#allocation3 + $0x20] sm:$0xf]
    %v534 = vld [vmem:[#allocation3 + $0x24] sm:$0xf]
    %v535 = vld [vmem:[#allocation3 + $0x28] sm:$0xf]
    %v536 = vld [vmem:[#allocation3 + $0x2c] sm:$0xf]
    %v537 = vld [vmem:[#allocation3 + $0x30] sm:$0xf]
    %v538 = vld [vmem:[#allocation3 + $0x34] sm:$0xf]
    %v539 = vld [vmem:[#allocation3 + $0x38] sm:$0xf]
    %v540 = vld [vmem:[#allocation3 + $0x3c] sm:$0xf]
    %v541 = vld [vmem:[%s6] sm:$0x1]
    %v543 = vlaneseq
    %v544 = vshrl.u32 %v543, 7
    %v545 = vsub.s32 0, %v544
    %v546 = vrot.slane %v541, %v545
    %v564 = vunpack.c.l.b16 %v525
    %v565 = vunpack.c.l.b16 %v526
    %v566 = vunpack.c.l.b16 %v527
    %v567 = vunpack.c.l.b16 %v528
    %v568 = vunpack.c.l.b16 %v529
    %v569 = vunpack.c.l.b16 %v530
    %v570 = vunpack.c.l.b16 %v531
    %v571 = vunpack.c.l.b16 %v532
    %v572 = vunpack.c.l.b16 %v533
    %v573 = vunpack.c.l.b16 %v534
    %v574 = vunpack.c.l.b16 %v535
    %v575 = vunpack.c.l.b16 %v536
    %v576 = vunpack.c.l.b16 %v537
    %v577 = vunpack.c.l.b16 %v538
    %v578 = vunpack.c.l.b16 %v539
    %v579 = vunpack.c.l.b16 %v540
    %v580 = vpack.c.b16 %v565, %v564
    %v581 = vpack.c.b16 %v567, %v566
    %v582 = vpack.c.b16 %v569, %v568
    %v583 = vpack.c.b16 %v571, %v570
    %v584 = vpack.c.b16 %v573, %v572
    %v585 = vpack.c.b16 %v575, %v574
    %v586 = vpack.c.b16 %v577, %v576
    %v587 = vpack.c.b16 %v579, %v578
    %596 = vmatprep.subr.bf16.mxu0 0
    %597 = vmatpush1.bf16.msra.mxu0 %v580
    %598 = vmatprep.subr.bf16.mxu0 0
    %599 = vmatpush1.bf16.msra.mxu0 %v581
    %600 = vmatprep.subr.bf16.mxu0 0
    %601 = vmatpush1.bf16.msra.mxu0 %v582
    %602 = vmatprep.subr.bf16.mxu0 0
    %603 = vmatpush1.bf16.msra.mxu0 %v583
    %604 = vmatprep.subr.bf16.mxu0 0
    %605 = vmatpush1.bf16.msra.mxu0 %v584
    %606 = vmatprep.subr.bf16.mxu0 0
    %607 = vmatpush1.bf16.msra.mxu0 %v585
    %608 = vmatprep.subr.bf16.mxu0 0
    %609 = vmatpush1.bf16.msra.mxu0 %v586
    %610 = vmatprep.subr.bf16.mxu0 0
    %611 = vmatpush1.bf16.msra.mxu0 %v587
    %612 = vmatprep.subr.bf16.mxu0 0
    %613 = vmatpush1.bf16.msra.mxu0 0
    %614 = vmatprep.subr.bf16.mxu0 0
    %615 = vmatpush1.bf16.msra.mxu0 0
    %616 = vmatprep.subr.bf16.mxu0 0
    %617 = vmatpush1.bf16.msra.mxu0 0
    %618 = vmatprep.subr.bf16.mxu0 0
    %619 = vmatpush1.bf16.msra.mxu0 0
    %620 = vmatprep.subr.bf16.mxu0 0
    %621 = vmatpush1.bf16.msra.mxu0 0
    %622 = vmatprep.subr.bf16.mxu0 0
    %623 = vmatpush1.bf16.msra.mxu0 0
    %624 = vmatprep.subr.bf16.mxu0 0
    %625 = vmatpush1.bf16.msra.mxu0 0
    %626 = vmatprep.subr.bf16.mxu0 0
    %627 = vmatpush1.bf16.msra.mxu0 0
    %628 = vmatprep.mubr.bf16.mxu0 0
    %629 = vmatmul.mubr.bf16.gmra.mrb[0].mxu0 %v517
    %v630 = vpop.f32.mrb[0].mxu0
    %v631 = vadd.f32 %v546, %v630
    %v632 = vpop.f32.mrb[0].mxu0
    %v633 = vpop.f32.mrb[0].mxu0
    %v634 = vadd.f32 %v546, %v633
    %v635 = vpop.f32.mrb[0].mxu0
    %636 = vmatprep.mubr.bf16.mxu0 0
    %637 = vmatmul.mubr.bf16.gmra.mrb[0].mxu0 %v518
    %v638 = vpop.f32.mrb[0].mxu0
    %v639 = vadd.f32 %v546, %v638
    %v640 = vpop.f32.mrb[0].mxu0
    %v641 = vpop.f32.mrb[0].mxu0
    %v642 = vadd.f32 %v546, %v641
    %v643 = vpop.f32.mrb[0].mxu0
    %644 = vmatprep.mubr.bf16.mxu0 0
    %645 = vmatmul.mubr.bf16.gmra.mrb[0].mxu0 %v519
    %v646 = vpop.f32.mrb[0].mxu0
    %v647 = vadd.f32 %v546, %v646
    %v648 = vpop.f32.mrb[0].mxu0
    %v649 = vpop.f32.mrb[0].mxu0
    %v650 = vadd.f32 %v546, %v649
    %v651 = vpop.f32.mrb[0].mxu0
    %652 = vmatprep.mubr.bf16.mxu0 0
    %653 = vmatmul.mubr.bf16.gmra.mrb[0].mxu0 %v520
    %v654 = vpop.f32.mrb[0].mxu0
    %v655 = vadd.f32 %v546, %v654
    %v656 = vpop.f32.mrb[0].mxu0
    %v657 = vpop.f32.mrb[0].mxu0
    %v658 = vadd.f32 %v546, %v657
    %v659 = vpop.f32.mrb[0].mxu0
    %660 = vmatprep.mubr.bf16.mxu0 0
    %661 = vmatmul.mubr.bf16.gmra.mrb[0].mxu0 %v521
    %v662 = vpop.f32.mrb[0].mxu0
    %v663 = vadd.f32 %v546, %v662
    %v664 = vpop.f32.mrb[0].mxu0
    %v665 = vpop.f32.mrb[0].mxu0
    %v666 = vadd.f32 %v546, %v665
    %v667 = vpop.f32.mrb[0].mxu0
    %668 = vmatprep.mubr.bf16.mxu0 0
    %669 = vmatmul.mubr.bf16.gmra.mrb[0].mxu0 %v522
    %v670 = vpop.f32.mrb[0].mxu0
    %v671 = vadd.f32 %v546, %v670
    %v672 = vpop.f32.mrb[0].mxu0
    %v673 = vpop.f32.mrb[0].mxu0
    %v674 = vadd.f32 %v546, %v673
    %v675 = vpop.f32.mrb[0].mxu0
    %676 = vmatprep.mubr.bf16.mxu0 0
    %677 = vmatmul.mubr.bf16.gmra.mrb[0].mxu0 %v523
    %v678 = vpop.f32.mrb[0].mxu0
    %v679 = vadd.f32 %v546, %v678
    %v680 = vpop.f32.mrb[0].mxu0
    %v681 = vpop.f32.mrb[0].mxu0
    %v682 = vadd.f32 %v546, %v681
    %v683 = vpop.f32.mrb[0].mxu0
    %684 = vmatprep.mubr.bf16.mxu0 0
    %685 = vmatmul.mubr.bf16.gmra.mrb[0].mxu0 %v524
    %v686 = vpop.f32.mrb[0].mxu0
    %v687 = vadd.f32 %v546, %v686
    %v688 = vpop.f32.mrb[0].mxu0
    %v689 = vpop.f32.mrb[0].mxu0
    %v690 = vadd.f32 %v546, %v689
    %v691 = vpop.f32.mrb[0].mxu0
    %692 = vdwg.mxu0
    %v693 = vmax.f32 %v631, 0.0
    %v694 = vmax.f32 %v634, 0.0
    %v695 = vmax.f32 %v639, 0.0
    %v696 = vmax.f32 %v642, 0.0
    %v697 = vmax.f32 %v647, 0.0
    %v698 = vmax.f32 %v650, 0.0
    %v699 = vmax.f32 %v655, 0.0
    %v700 = vmax.f32 %v658, 0.0
    %v701 = vmax.f32 %v663, 0.0
    %v702 = vmax.f32 %v666, 0.0
    %v703 = vmax.f32 %v671, 0.0
    %v704 = vmax.f32 %v674, 0.0
    %v705 = vmax.f32 %v679, 0.0
    %v706 = vmax.f32 %v682, 0.0
    %v707 = vmax.f32 %v687, 0.0
    %v708 = vmax.f32 %v690, 0.0
    %v709 = vpack.c.bf16 %v694, %v693
    %v710 = vpack.c.bf16 %v696, %v695
    %v711 = vpack.c.bf16 %v698, %v697
    %v712 = vpack.c.bf16 %v700, %v699
    %v713 = vpack.c.bf16 %v702, %v701
    %v714 = vpack.c.bf16 %v704, %v703
    %v715 = vpack.c.bf16 %v706, %v705
    %v716 = vpack.c.bf16 %v708, %v707
    %v717 = vld [vmem:[#allocation6] sm:$0xf]
    %v718 = vld [vmem:[#allocation6 + $0x4] sm:$0xf]
    %v719 = vld [vmem:[#allocation6 + $0x8] sm:$0xf]
    %v720 = vld [vmem:[#allocation6 + $0xc] sm:$0xf]
    %v721 = vld [vmem:[#allocation6 + $0x10] sm:$0xf]
    %v722 = vld [vmem:[#allocation6 + $0x14] sm:$0xf]
    %v723 = vld [vmem:[#allocation6 + $0x18] sm:$0xf]
    %v724 = vld [vmem:[#allocation6 + $0x1c] sm:$0xf]
    %v725 = vld [vmem:[#allocation6 + $0x20] sm:$0xf]
    %v726 = vld [vmem:[#allocation6 + $0x24] sm:$0xf]
    %v727 = vld [vmem:[#allocation6 + $0x28] sm:$0xf]
    %v728 = vld [vmem:[#allocation6 + $0x2c] sm:$0xf]
    %v729 = vld [vmem:[#allocation6 + $0x30] sm:$0xf]
    %v730 = vld [vmem:[#allocation6 + $0x34] sm:$0xf]
    %v731 = vld [vmem:[#allocation6 + $0x38] sm:$0xf]
    %v732 = vld [vmem:[#allocation6 + $0x3c] sm:$0xf]
    %v733 = vld [vmem:[%s8] sm:$0x1]
    %v735 = vlaneseq
    %v736 = vshrl.u32 %v735, 7
    %v737 = vsub.s32 0, %v736
    %v738 = vrot.slane %v733, %v737
    %v756 = vunpack.c.l.b16 %v717
    %v757 = vunpack.c.l.b16 %v718
    %v758 = vunpack.c.l.b16 %v719
    %v759 = vunpack.c.l.b16 %v720
    %v760 = vunpack.c.l.b16 %v721
    %v761 = vunpack.c.l.b16 %v722
    %v762 = vunpack.c.l.b16 %v723
    %v763 = vunpack.c.l.b16 %v724
    %v764 = vunpack.c.l.b16 %v725
    %v765 = vunpack.c.l.b16 %v726
    %v766 = vunpack.c.l.b16 %v727
    %v767 = vunpack.c.l.b16 %v728
    %v768 = vunpack.c.l.b16 %v729
    %v769 = vunpack.c.l.b16 %v730
    %v770 = vunpack.c.l.b16 %v731
    %v771 = vunpack.c.l.b16 %v732
    %v772 = vpack.c.b16 %v757, %v756
    %v773 = vpack.c.b16 %v759, %v758
    %v774 = vpack.c.b16 %v761, %v760
    %v775 = vpack.c.b16 %v763, %v762
    %v776 = vpack.c.b16 %v765, %v764
    %v777 = vpack.c.b16 %v767, %v766
    %v778 = vpack.c.b16 %v769, %v768
    %v779 = vpack.c.b16 %v771, %v770
    %788 = vmatprep.subr.bf16.mxu0 0
    %789 = vmatpush1.bf16.msra.mxu0 %v772
    %790 = vmatprep.subr.bf16.mxu0 0
    %791 = vmatpush1.bf16.msra.mxu0 %v773
    %792 = vmatprep.subr.bf16.mxu0 0
    %793 = vmatpush1.bf16.msra.mxu0 %v774
    %794 = vmatprep.subr.bf16.mxu0 0
    %795 = vmatpush1.bf16.msra.mxu0 %v775
    %796 = vmatprep.subr.bf16.mxu0 0
    %797 = vmatpush1.bf16.msra.mxu0 %v776
    %798 = vmatprep.subr.bf16.mxu0 0
    %799 = vmatpush1.bf16.msra.mxu0 %v777
    %800 = vmatprep.subr.bf16.mxu0 0
    %801 = vmatpush1.bf16.msra.mxu0 %v778
    %802 = vmatprep.subr.bf16.mxu0 0
    %803 = vmatpush1.bf16.msra.mxu0 %v779
    %804 = vmatprep.subr.bf16.mxu0 0
    %805 = vmatpush1.bf16.msra.mxu0 0
    %806 = vmatprep.subr.bf16.mxu0 0
    %807 = vmatpush1.bf16.msra.mxu0 0
    %808 = vmatprep.subr.bf16.mxu0 0
    %809 = vmatpush1.bf16.msra.mxu0 0
    %810 = vmatprep.subr.bf16.mxu0 0
    %811 = vmatpush1.bf16.msra.mxu0 0
    %812 = vmatprep.subr.bf16.mxu0 0
    %813 = vmatpush1.bf16.msra.mxu0 0
    %814 = vmatprep.subr.bf16.mxu0 0
    %815 = vmatpush1.bf16.msra.mxu0 0
    %816 = vmatprep.subr.bf16.mxu0 0
    %817 = vmatpush1.bf16.msra.mxu0 0
    %818 = vmatprep.subr.bf16.mxu0 0
    %819 = vmatpush1.bf16.msra.mxu0 0
    %820 = vmatprep.mubr.bf16.mxu0 0
    %821 = vmatmul.mubr.bf16.gmra.mrb[0].mxu0 %v709
    %v822 = vpop.f32.mrb[0].mxu0
    %v823 = vadd.f32 %v738, %v822
    %v824 = vpop.f32.mrb[0].mxu0
    %v825 = vpop.f32.mrb[0].mxu0
    %v826 = vadd.f32 %v738, %v825
    %v827 = vpop.f32.mrb[0].mxu0
    %828 = vmatprep.mubr.bf16.mxu0 0
    %829 = vmatmul.mubr.bf16.gmra.mrb[0].mxu0 %v710
    %v830 = vpop.f32.mrb[0].mxu0
    %v831 = vadd.f32 %v738, %v830
    %v832 = vpop.f32.mrb[0].mxu0
    %v833 = vpop.f32.mrb[0].mxu0
    %v834 = vadd.f32 %v738, %v833
    %v835 = vpop.f32.mrb[0].mxu0
    %836 = vmatprep.mubr.bf16.mxu0 0
    %837 = vmatmul.mubr.bf16.gmra.mrb[0].mxu0 %v711
    %v838 = vpop.f32.mrb[0].mxu0
    %v839 = vadd.f32 %v738, %v838
    %v840 = vpop.f32.mrb[0].mxu0
    %v841 = vpop.f32.mrb[0].mxu0
    %v842 = vadd.f32 %v738, %v841
    %v843 = vpop.f32.mrb[0].mxu0
    %844 = vmatprep.mubr.bf16.mxu0 0
    %845 = vmatmul.mubr.bf16.gmra.mrb[0].mxu0 %v712
    %v846 = vpop.f32.mrb[0].mxu0
    %v847 = vadd.f32 %v738, %v846
    %v848 = vpop.f32.mrb[0].mxu0
    %v849 = vpop.f32.mrb[0].mxu0
    %v850 = vadd.f32 %v738, %v849
    %v851 = vpop.f32.mrb[0].mxu0
    %852 = vmatprep.mubr.bf16.mxu0 0
    %853 = vmatmul.mubr.bf16.gmra.mrb[0].mxu0 %v713
    %v854 = vpop.f32.mrb[0].mxu0
    %v855 = vadd.f32 %v738, %v854
    %v856 = vpop.f32.mrb[0].mxu0
    %v857 = vpop.f32.mrb[0].mxu0
    %v858 = vadd.f32 %v738, %v857
    %v859 = vpop.f32.mrb[0].mxu0
    %860 = vmatprep.mubr.bf16.mxu0 0
    %861 = vmatmul.mubr.bf16.gmra.mrb[0].mxu0 %v714
    %v862 = vpop.f32.mrb[0].mxu0
    %v863 = vadd.f32 %v738, %v862
    %v864 = vpop.f32.mrb[0].mxu0
    %v865 = vpop.f32.mrb[0].mxu0
    %v866 = vadd.f32 %v738, %v865
    %v867 = vpop.f32.mrb[0].mxu0
    %868 = vmatprep.mubr.bf16.mxu0 0
    %869 = vmatmul.mubr.bf16.gmra.mrb[0].mxu0 %v715
    %v870 = vpop.f32.mrb[0].mxu0
    %v871 = vadd.f32 %v738, %v870
    %v872 = vpop.f32.mrb[0].mxu0
    %v873 = vpop.f32.mrb[0].mxu0
    %v874 = vadd.f32 %v738, %v873
    %v875 = vpop.f32.mrb[0].mxu0
    %876 = vmatprep.mubr.bf16.mxu0 0
    %877 = vmatmul.mubr.bf16.gmra.mrb[0].mxu0 %v716
    %v878 = vpop.f32.mrb[0].mxu0
    %v879 = vadd.f32 %v738, %v878
    %v880 = vpop.f32.mrb[0].mxu0
    %v881 = vpop.f32.mrb[0].mxu0
    %v882 = vadd.f32 %v738, %v881
    %v883 = vpop.f32.mrb[0].mxu0
    %884 = vdwg.mxu0
    %v885 = vmax.f32 %v823, 0.0
    %v886 = vmax.f32 %v826, 0.0
    %v887 = vmax.f32 %v831, 0.0
    %v888 = vmax.f32 %v834, 0.0
    %v889 = vmax.f32 %v839, 0.0
    %v890 = vmax.f32 %v842, 0.0
    %v891 = vmax.f32 %v847, 0.0
    %v892 = vmax.f32 %v850, 0.0
    %v893 = vmax.f32 %v855, 0.0
    %v894 = vmax.f32 %v858, 0.0
    %v895 = vmax.f32 %v863, 0.0
    %v896 = vmax.f32 %v866, 0.0
    %v897 = vmax.f32 %v871, 0.0
    %v898 = vmax.f32 %v874, 0.0
    %v899 = vmax.f32 %v879, 0.0
    %v900 = vmax.f32 %v882, 0.0
    %v901 = vpack.c.bf16 %v886, %v885
    %v902 = vpack.c.bf16 %v888, %v887
    %v903 = vpack.c.bf16 %v890, %v889
    %v904 = vpack.c.bf16 %v892, %v891
    %v905 = vpack.c.bf16 %v894, %v893
    %v906 = vpack.c.bf16 %v896, %v895
    %v907 = vpack.c.bf16 %v898, %v897
    %v908 = vpack.c.bf16 %v900, %v899
    %v909 = vld [vmem:[%s9] sm:$0x1]
    %v910 = vld [vmem:[%s10] sm:$0x1]
    %911 = vmatprep.subr.bf16.mxu0 0
    %912 = vmatpush1.bf16.xpose.msra.mxu0 %v901
    %913 = vmatprep.subr.bf16.mxu0 0
    %914 = vmatpush1.bf16.xpose.msra.mxu0 %v902
    %915 = vmatprep.subr.bf16.mxu0 0
    %916 = vmatpush1.bf16.xpose.msra.mxu0 %v903
    %917 = vmatprep.subr.bf16.mxu0 0
    %918 = vmatpush1.bf16.xpose.msra.mxu0 %v904
    %919 = vmatprep.subr.bf16.mxu0 0
    %920 = vmatpush1.bf16.xpose.msra.mxu0 %v905
    %921 = vmatprep.subr.bf16.mxu0 0
    %922 = vmatpush1.bf16.xpose.msra.mxu0 %v906
    %923 = vmatprep.subr.bf16.mxu0 0
    %924 = vmatpush1.bf16.xpose.msra.mxu0 %v907
    %925 = vmatprep.subr.bf16.mxu0 0
    %926 = vmatpush1.bf16.xpose.msra.mxu0 %v908
    %927 = vmatprep.subr.bf16.mxu0 0
    %928 = vmatpush1.bf16.xpose.msra.mxu0 0
    %929 = vmatprep.subr.bf16.mxu0 0
    %930 = vmatpush1.bf16.xpose.msra.mxu0 0
    %931 = vmatprep.subr.bf16.mxu0 0
    %932 = vmatpush1.bf16.xpose.msra.mxu0 0
    %933 = vmatprep.subr.bf16.mxu0 0
    %934 = vmatpush1.bf16.xpose.msra.mxu0 0
    %935 = vmatprep.subr.bf16.mxu0 0
    %936 = vmatpush1.bf16.xpose.msra.mxu0 0
    %937 = vmatprep.subr.bf16.mxu0 0
    %938 = vmatpush1.bf16.xpose.msra.mxu0 0
    %939 = vmatprep.subr.bf16.mxu0 0
    %940 = vmatpush1.bf16.xpose.msra.mxu0 0
    %941 = vmatprep.subr.bf16.mxu0 0
    %942 = vmatpush1.bf16.xpose.msra.mxu0 0
    %943 = vmatprep.mubr.bf16.mxu0 0
    %944 = vmatmul.mubr.bf16.gmra.mrb[0].mxu0 %v909
    %v945 = vpop.f32.mrb[0].mxu0
    %v946 = vadd.f32 %v910, %v945
    %v947 = vpop.f32.mrb[0].mxu0
    %v948 = vpop.f32.mrb[0].mxu0
    %v949 = vpop.f32.mrb[0].mxu0
    %950 = vdwg.mxu0
    %951 = vst [vmem:[#allocation8] sm:$0x1] %v946
    // Predicated region
    $region54: #{tpu_custom_call.1} parent=1 // pred_check
      _
    $region55: #{tpu_custom_call.1} parent=1 // pred_check_branch
      %953 = sbr.rel (0) target = $region57
    $region56: #{tpu_custom_call.1} parent=1 // pred_region
      %s955 = ssub.s32 16, 16
      %956 = vsyncadd [#allocation5], %s955
      %s958 = sshll.u32 [#allocation8], 4
      %s959 = int_to_ptr.vmem [resolvable:$true] %s958
      %961 = dma.vmem_to_hbm [thread:$0]  %s959, 16, %s11, [#allocation5]
    $region57: #{tpu_custom_call.1} parent=1 // pred_fallthru
      _
    // Predicated region
    $region58: #{tpu_custom_call.1} parent=1 // pred_check
      _
    $region59: #{tpu_custom_call.1} parent=1 // pred_check_branch
      %963 = sbr.rel (0) target = $region61
    $region60: #{tpu_custom_call.1} parent=1 // pred_region
      %964 = dma.done [#allocation5], 16
    $region61: #{tpu_custom_call.1} parent=1 // pred_fallthru
      _
    %965 = vsyncpa [#allocation4], 1
    %966 = vsyncpa [#allocation7], 1
    %967 = vsyncpa [#allocation5], 1

</llo_original>
